<compile_context>
chip_gen: v7x
topology: tpu7x:2x2x1
jax: 0.10.0
libtpu: 0.0.40
codegen_flags: <defaults>
</compile_context>

<pallas_src>
import collections

import jax
import jax.numpy as jnp
from jax.experimental import pallas as pl
from jax.experimental.pallas import tpu as pltpu


def _round_up(x, m):
    return (x + m - 1) // m * m


# Conservative cross-generation tile budget: v7x has 64 MiB physical VMEM per TC,
# v5e/v6e have 128 MiB; keeping the working set around 40 MiB leaves pipelining
# headroom on every generation.
_VMEM_BUDGET = 40 << 20

ClassifierMeta = collections.namedtuple("ClassifierMeta", ["num_classes", "tf"])


def _vmem_bytes(TB, TF, D_pad, R_pad, K_pad):
    streamed = 2 * 2 * (TB * TF + TF * D_pad)          # x + w_enc slabs, bf16, double-buffered
    resident = 2 * (D_pad * R_pad + R_pad * D_pad + D_pad * K_pad) \
        + 4 * (D_pad + K_pad)                           # single-buffered weights + biases
    acc = 4 * TB * D_pad                                # f32 feats accumulator
    out = 2 * 4 * TB * K_pad                            # f32 logits tile, double-buffered
    return streamed + resident + acc + out


def _choose_tf(F, D_pad):
    """Reduction-slab width: as large as possible (fewer grid steps / less per-step
    overhead), but keep the double-buffered w_enc slab within half the VMEM budget."""
    TF = min(2048, _round_up(F, 128))
    while TF > 256 and 2 * 2 * TF * D_pad > _VMEM_BUDGET // 2:
        TF = max(256, _round_up(TF // 2, 128))
    return TF


def _choose_tb(B, TF, D_pad, R_pad, K_pad):
    """Batch tile: as large as VMEM allows so w_enc is streamed from HBM as few times
    as possible; prefer exactly two batch tiles when the batch is large enough so
    v7x's two TensorCores both get work on the "parallel" axis."""
    B16 = _round_up(B, 16)                               # bf16 sublane packing
    TB = _round_up(-(-B16 // 2), 16) if B16 >= 32 else B16
    while TB > 16 and _vmem_bytes(TB, TF, D_pad, R_pad, K_pad) > _VMEM_BUDGET:
        TB = max(16, _round_up(TB // 2, 16))
    return TB


def classifier_kernel(x_ref, wenc_ref, benc_ref, wd_ref, wu_ref,
                      wc_ref, bc_ref, out_ref, feat_acc):
    # x_ref:    [TB, TF]        bf16  flattened-image slab (streamed over F)
    # wenc_ref: [TF, D_pad]     bf16  encoder weight slab  (streamed over F)
    # benc_ref: [1, D_pad]      f32
    # wd_ref:   [D_pad, R_pad]  bf16  down_proj.weight^T
    # wu_ref:   [R_pad, D_pad]  bf16  up_proj.weight^T
    # wc_ref:   [D_pad, K_pad]  bf16  classification_head.weight^T
    # bc_ref:   [1, K_pad]      f32
    # out_ref:  [TB, K_pad]     f32
    # feat_acc: [TB, D_pad]     f32   VMEM scratch; persists across the F axis
    k = pl.program_id(1)

    @pl.when(k == 0)
    def _init():
        feat_acc[...] = jnp.zeros_like(feat_acc)

    # image_encoder: accumulate the F-reduction in f32 on the MXU.
    feat_acc[...] += jnp.dot(x_ref[...], wenc_ref[...],
                             preferred_element_type=jnp.float32)

    @pl.when(k == pl.num_programs(1) - 1)
    def _finalize():
        # NOTE: padded batch rows end up with feats == b_enc (not zero); they flow
        # through the adapter/head but are sliced off by the wrapper, never read.
        feats = feat_acc[...] + benc_ref[...]                     # f32, [TB, D_pad]

        # Low-rank adapter: sub = relu(feats @ Wd) @ Wu (FLOP-negligible vs encoder).
        sub = jnp.dot(feats.astype(wd_ref.dtype), wd_ref[...],
                      preferred_element_type=jnp.float32)
        sub = jnp.maximum(sub, 0.0)
        sub = jnp.dot(sub.astype(wu_ref.dtype), wu_ref[...],
                      preferred_element_type=jnp.float32)

        feats = feats - sub                                       # residual subtract

        # classification_head (lane-dense padded K).
        logits = jnp.dot(feats.astype(wc_ref.dtype), wc_ref[...],
                         preferred_element_type=jnp.float32)
        out_ref[...] = (logits + bc_ref[...]).astype(out_ref.dtype)


def prepare_params(params, dtype=jnp.bfloat16):
    """One-time pad/cast of weights into MXU-friendly, lane-dense layouts.

    Call once outside the hot path and reuse: re-padding / re-casting w_enc on every
    forward would add a full read(f32)+write(bf16) HBM pass over the largest operand
    of an otherwise HBM-bound kernel.
    """
    w_enc, b_enc = params["w_enc"], params["b_enc"]
    w_down, w_up = params["w_down"], params["w_up"]
    w_cls, b_cls = params["w_cls"], params["b_cls"]

    F, D = w_enc.shape
    R = w_down.shape[1]
    K = w_cls.shape[1]

    D_pad = _round_up(D, 128)        # lane-dense feature dim (v6e MXU prefers >= 256)
    R_pad = _round_up(R, 128)
    K_pad = _round_up(K, 128)        # lane-dense logits -> unmasked stores
    TF = _choose_tf(F, D_pad)
    F_pad = _round_up(F, TF)

    arrays = {
        "w_enc": jnp.pad(w_enc, ((0, F_pad - F), (0, D_pad - D))).astype(dtype),
        "b_enc": jnp.pad(b_enc, ((0, 0), (0, D_pad - D))).astype(jnp.float32),
        "w_down": jnp.pad(w_down, ((0, D_pad - D), (0, R_pad - R))).astype(dtype),
        "w_up": jnp.pad(w_up, ((0, R_pad - R), (0, D_pad - D))).astype(dtype),
        "w_cls": jnp.pad(w_cls, ((0, D_pad - D), (0, K_pad - K))).astype(dtype),
        "b_cls": jnp.pad(b_cls, ((0, 0), (0, K_pad - K))).astype(jnp.float32),
    }
    # TODO(synk): optional fp8 (v7x) / int8 (v6e) quantization of w_enc with per-slab
    # scales folded into the finalize would halve the dominant HBM stream.
    return arrays, ClassifierMeta(num_classes=K, tf=TF)


def image_classifier_with_mapping(x_nchw, arrays, meta):
    """x_nchw: [B, C, H, W] float32. arrays/meta come from prepare_params().
    Returns logits [B, num_classes] (float32)."""
    wenc_p, benc_p = arrays["w_enc"], arrays["b_enc"]
    wd_p, wu_p = arrays["w_down"], arrays["w_up"]
    wcls_p, bcls_p = arrays["w_cls"], arrays["b_cls"]

    F_pad, D_pad = wenc_p.shape
    R_pad = wd_p.shape[1]
    K_pad = wcls_p.shape[1]
    TF = meta.tf
    K = meta.num_classes

    B = x_nchw.shape[0]
    x_flat = x_nchw.reshape(B, -1)          # glue: row-major NCHW flatten
    F = x_flat.shape[1]

    TB = _choose_tb(B, TF, D_pad, R_pad, K_pad)
    B_pad = _round_up(B, TB)
    n_btiles = B_pad // TB
    grid = (n_btiles, F_pad // TF)

    # x pad + bf16 cast: under jit this fuses into a single HBM pass; the big per-call
    # pad/cast (w_enc) is already hoisted into prepare_params().
    # TODO(synk): CompilerParams(allow_input_fusion=...) on the x operand could remove
    # even this pass by fusing the pad/cast into the pallas_call's producer.
    x_p = jnp.pad(x_flat, ((0, B_pad - B), (0, F_pad - F))).astype(jnp.bfloat16)

    vbytes = _vmem_bytes(TB, TF, D_pad, R_pad, K_pad)
    # Explicit scoped-VMEM limit: v5e's default is 16 MiB, v7x has 64 MiB physical.
    vmem_limit = int(max(16 << 20, min(int(vbytes * 1.25) + (2 << 20), 48 << 20)))

    cost = pl.CostEstimate(
        flops=2 * B_pad * (F_pad * D_pad + D_pad * R_pad + R_pad * D_pad + D_pad * K_pad),
        transcendentals=0,
        bytes_accessed=(
            B_pad * F_pad * 2                          # x slabs (bf16)
            + n_btiles * F_pad * D_pad * 2             # w_enc re-streamed once per batch tile
            + (D_pad * R_pad + R_pad * D_pad + D_pad * K_pad) * 2
            + (D_pad + K_pad) * 4                      # biases
            + B_pad * K_pad * 4),                      # logits write
    )

    # Grid-invariant operands: constant index_map -> a single VMEM buffer suffices.
    resident = dict(pipeline_mode=pl.Buffered(1))

    out = pl.pallas_call(
        classifier_kernel,
        out_shape=jax.ShapeDtypeStruct((B_pad, K_pad), jnp.float32),
        grid_spec=pltpu.PrefetchScalarGridSpec(
            num_scalar_prefetch=0,
            grid=grid,
            in_specs=[
                pl.BlockSpec((TB, TF), lambda i, k: (i, k)),        # x slab (streamed)
                pl.BlockSpec((TF, D_pad), lambda i, k: (k, 0)),     # w_enc slab (streamed)
                pl.BlockSpec((1, D_pad), lambda i, k: (0, 0), **resident),      # b_enc
                pl.BlockSpec((D_pad, R_pad), lambda i, k: (0, 0), **resident),  # w_down
                pl.BlockSpec((R_pad, D_pad), lambda i, k: (0, 0), **resident),  # w_up
                pl.BlockSpec((D_pad, K_pad), lambda i, k: (0, 0), **resident),  # w_cls
                pl.BlockSpec((1, K_pad), lambda i, k: (0, 0), **resident),      # b_cls
            ],
            out_specs=pl.BlockSpec((TB, K_pad), lambda i, k: (i, 0)),
            scratch_shapes=[pltpu.VMEM((TB, D_pad), jnp.float32)],  # feats accumulator
        ),
        compiler_params=pltpu.CompilerParams(
            dimension_semantics=("parallel", "arbitrary"),
            vmem_limit_bytes=vmem_limit,
        ),
        cost_estimate=cost,
    )(x_p, wenc_p, benc_p, wd_p, wu_p, wcls_p, bcls_p)

    return out[:B, :K]


def init_params(key, flat_dim, feat_dim, rank, num_classes):
    ks = jax.random.split(key, 5)
    scale = lambda fan_in: 1.0 / jnp.sqrt(jnp.float32(fan_in))
    return {
        # synthetic image_encoder (linear patch/pixel embedding)
        "w_enc": jax.random.normal(ks[0], (flat_dim, feat_dim), jnp.float32) * scale(flat_dim),
        "b_enc": jnp.zeros((1, feat_dim), jnp.float32),
        # down_proj.weight^T  (Linear(feat_dim -> rank), bias=False)
        "w_down": jax.random.normal(ks[1], (feat_dim, rank), jnp.float32) * scale(feat_dim),
        # up_proj.weight^T    (Linear(rank -> feat_dim), bias=False)
        "w_up": jax.random.normal(ks[2], (rank, feat_dim), jnp.float32) * scale(rank),
        # classification_head weight^T + bias
        "w_cls": jax.random.normal(ks[3], (feat_dim, num_classes), jnp.float32) * scale(feat_dim),
        "b_cls": jax.random.normal(ks[4], (1, num_classes), jnp.float32) * 0.01,
    }


if __name__ == "__main__":
    B, C, H, W = 2, 4, 16, 16              # NCHW image input
    FEAT_DIM, RANK, NUM_CLASSES = 32, 8, 10

    key = jax.random.PRNGKey(0)
    kx, kp = jax.random.split(key)
    x = jax.random.normal(kx, (B, C, H, W), jnp.float32)
    params = init_params(kp, C * H * W, FEAT_DIM, RANK, NUM_CLASSES)

    # One-time weight prep (hot path must not re-pay the w_enc pad/cast HBM pass).
    arrays, meta = prepare_params(params)

    fwd = jax.jit(lambda xb, ar: image_classifier_with_mapping(xb, ar, meta))
    out = jax.block_until_ready(fwd(x, arrays))
    assert out.shape == (B, NUM_CLASSES)

    # Pure-JAX reference using the same bf16-operand / f32-accumulation scheme.
    cdt = jnp.bfloat16
    xf = x.reshape(B, -1).astype(cdt)
    feats = jnp.dot(xf, params["w_enc"].astype(cdt),
                    preferred_element_type=jnp.float32) + params["b_enc"]
    sub = jnp.maximum(jnp.dot(feats.astype(cdt), params["w_down"].astype(cdt),
                              preferred_element_type=jnp.float32), 0.0)
    sub = jnp.dot(sub.astype(cdt), params["w_up"].astype(cdt),
                  preferred_element_type=jnp.float32)
    feats = feats - sub
    ref = jnp.dot(feats.astype(cdt), params["w_cls"].astype(cdt),
                  preferred_element_type=jnp.float32) + params["b_cls"]

    assert jnp.allclose(out, ref, atol=5e-2, rtol=5e-2), \
        float(jnp.max(jnp.abs(out - ref)))

    print("KERNEL_OK")
</pallas_src>

<mosaic_0001>
module attributes {stable_mosaic.version = 11 : i64} {
  func.func @classifier_kernel(%arg0: i32, %arg1: i32, %arg2: memref<16x1024xbf16, #tpu.memory_space<vmem>>, %arg3: memref<1024x128xbf16, #tpu.memory_space<vmem>>, %arg4: memref<1x128xf32, #tpu.memory_space<vmem>>, %arg5: memref<128x128xbf16, #tpu.memory_space<vmem>>, %arg6: memref<128x128xbf16, #tpu.memory_space<vmem>>, %arg7: memref<128x128xbf16, #tpu.memory_space<vmem>>, %arg8: memref<1x128xf32, #tpu.memory_space<vmem>>, %arg9: memref<16x128xf32, #tpu.memory_space<vmem>>, %arg10: memref<16x128xf32, #tpu.memory_space<vmem>>) attributes {dimension_semantics = [#tpu.dimension_semantics<parallel>, #tpu.dimension_semantics<arbitrary>], iteration_bounds = array<i64: 1, 1>, scalar_prefetch = 0 : i64, scratch_operands = 1 : i64, tpu.core_type = #tpu.core_type<tc>, window_params = [{transform_indices = @transform_0, window_bounds = array<i64: 16, 1024>}, {transform_indices = @transform_1, window_bounds = array<i64: 1024, 128>}, {pipeline_mode = #tpu.pipeline_mode<synchronous>, transform_indices = @transform_2, window_bounds = array<i64: 1, 128>}, {pipeline_mode = #tpu.pipeline_mode<synchronous>, transform_indices = @transform_3, window_bounds = array<i64: 128, 128>}, {pipeline_mode = #tpu.pipeline_mode<synchronous>, transform_indices = @transform_4, window_bounds = array<i64: 128, 128>}, {pipeline_mode = #tpu.pipeline_mode<synchronous>, transform_indices = @transform_5, window_bounds = array<i64: 128, 128>}, {pipeline_mode = #tpu.pipeline_mode<synchronous>, transform_indices = @transform_6, window_bounds = array<i64: 1, 128>}, {transform_indices = @transform_7, window_bounds = array<i64: 16, 128>}]} {
    %c0_i32 = arith.constant 0 : i32
    %0 = arith.cmpi eq, %arg1, %c0_i32 : i32
    %1 = arith.extui %0 : i1 to i32
    %c0_i32_0 = arith.constant 0 : i32
    %2 = arith.cmpi ne, %1, %c0_i32_0 : i32
    scf.if %2 {
      %cst_10 = arith.constant 0.000000e+00 : f32
      %12 = vector.broadcast %cst_10 : f32 to vector<16x128xf32>
      %c0_11 = arith.constant 0 : index
      %c0_12 = arith.constant 0 : index
      %13 = vector.load %arg10[%c0_11, %c0_12] : memref<16x128xf32, #tpu.memory_space<vmem>>, vector<16x128xf32>
      tpu.vector_store %arg10[%c0_11, %c0_12], %12 {strides = array<i32>} : memref<16x128xf32, #tpu.memory_space<vmem>>, vector<16x128xf32>,
    } else {
    }
    %c0 = arith.constant 0 : index
    %c0_1 = arith.constant 0 : index
    %3 = vector.load %arg10[%c0, %c0_1] : memref<16x128xf32, #tpu.memory_space<vmem>>, vector<16x128xf32>
    %c0_2 = arith.constant 0 : index
    %c0_3 = arith.constant 0 : index
    %4 = vector.load %arg2[%c0_2, %c0_3] : memref<16x1024xbf16, #tpu.memory_space<vmem>>, vector<16x1024xbf16>
    %c0_4 = arith.constant 0 : index
    %c0_5 = arith.constant 0 : index
    %5 = vector.load %arg3[%c0_4, %c0_5] : memref<1024x128xbf16, #tpu.memory_space<vmem>>, vector<1024x128xbf16>
    %cst = arith.constant dense<0.000000e+00> : vector<16x128xf32>
    %6 = tpu.matmul %4, %5, %cst {dimension_numbers = #tpu.dot_dimension_numbers<[1], [0], [0], [1], [0, 0, 1, 1], [], []>} : vector<16x1024xbf16>, vector<1024x128xbf16>, vector<16x128xf32> -> vector<16x128xf32>
    %7 = arith.addf %3, %6 : vector<16x128xf32>
    %c0_6 = arith.constant 0 : index
    %c0_7 = arith.constant 0 : index
    %8 = vector.load %arg10[%c0_6, %c0_7] : memref<16x128xf32, #tpu.memory_space<vmem>>, vector<16x128xf32>
    tpu.vector_store %arg10[%c0_6, %c0_7], %7 {strides = array<i32>} : memref<16x128xf32, #tpu.memory_space<vmem>>, vector<16x128xf32>,
    %c0_i32_8 = arith.constant 0 : i32
    %9 = arith.cmpi eq, %arg1, %c0_i32_8 : i32
    %10 = arith.extui %9 : i1 to i32
    %c0_i32_9 = arith.constant 0 : i32
    %11 = arith.cmpi ne, %10, %c0_i32_9 : i32
    scf.if %11 {
      %c0_10 = arith.constant 0 : index
      %c0_11 = arith.constant 0 : index
      %12 = vector.load %arg10[%c0_10, %c0_11] : memref<16x128xf32, #tpu.memory_space<vmem>>, vector<16x128xf32>
      %c0_12 = arith.constant 0 : index
      %c0_13 = arith.constant 0 : index
      %13 = vector.load %arg4[%c0_12, %c0_13] : memref<1x128xf32, #tpu.memory_space<vmem>>, vector<1x128xf32>
      %14 = vector.broadcast %13 : vector<1x128xf32> to vector<16x128xf32>
      %15 = arith.addf %12, %14 : vector<16x128xf32>
      %16 = arith.truncf %15 : vector<16x128xf32> to vector<16x128xbf16>
      %c0_14 = arith.constant 0 : index
      %c0_15 = arith.constant 0 : index
      %17 = vector.load %arg5[%c0_14, %c0_15] : memref<128x128xbf16, #tpu.memory_space<vmem>>, vector<128x128xbf16>
      %cst_16 = arith.constant dense<0.000000e+00> : vector<16x128xf32>
      %18 = tpu.matmul %16, %17, %cst_16 {dimension_numbers = #tpu.dot_dimension_numbers<[1], [0], [0], [1], [0, 0, 1, 1], [], []>} : vector<16x128xbf16>, vector<128x128xbf16>, vector<16x128xf32> -> vector<16x128xf32>
      %cst_17 = arith.constant 0.000000e+00 : f32
      %19 = vector.broadcast %cst_17 : f32 to vector<16x128xf32>
      %20 = arith.maximumf %18, %19 : vector<16x128xf32>
      %21 = arith.truncf %20 : vector<16x128xf32> to vector<16x128xbf16>
      %c0_18 = arith.constant 0 : index
      %c0_19 = arith.constant 0 : index
      %22 = vector.load %arg6[%c0_18, %c0_19] : memref<128x128xbf16, #tpu.memory_space<vmem>>, vector<128x128xbf16>
      %cst_20 = arith.constant dense<0.000000e+00> : vector<16x128xf32>
      %23 = tpu.matmul %21, %22, %cst_20 {dimension_numbers = #tpu.dot_dimension_numbers<[1], [0], [0], [1], [0, 0, 1, 1], [], []>} : vector<16x128xbf16>, vector<128x128xbf16>, vector<16x128xf32> -> vector<16x128xf32>
      %24 = arith.subf %15, %23 : vector<16x128xf32>
      %25 = arith.truncf %24 : vector<16x128xf32> to vector<16x128xbf16>
      %c0_21 = arith.constant 0 : index
      %c0_22 = arith.constant 0 : index
      %26 = vector.load %arg7[%c0_21, %c0_22] : memref<128x128xbf16, #tpu.memory_space<vmem>>, vector<128x128xbf16>
      %cst_23 = arith.constant dense<0.000000e+00> : vector<16x128xf32>
      %27 = tpu.matmul %25, %26, %cst_23 {dimension_numbers = #tpu.dot_dimension_numbers<[1], [0], [0], [1], [0, 0, 1, 1], [], []>} : vector<16x128xbf16>, vector<128x128xbf16>, vector<16x128xf32> -> vector<16x128xf32>
      %c0_24 = arith.constant 0 : index
      %c0_25 = arith.constant 0 : index
      %28 = vector.load %arg8[%c0_24, %c0_25] : memref<1x128xf32, #tpu.memory_space<vmem>>, vector<1x128xf32>
      %29 = vector.broadcast %28 : vector<1x128xf32> to vector<16x128xf32>
      %30 = arith.addf %27, %29 : vector<16x128xf32>
      %c0_26 = arith.constant 0 : index
      %c0_27 = arith.constant 0 : index
      %31 = vector.load %arg9[%c0_26, %c0_27] : memref<16x128xf32, #tpu.memory_space<vmem>>, vector<16x128xf32>
      tpu.vector_store %arg9[%c0_26, %c0_27], %30 {strides = array<i32>} : memref<16x128xf32, #tpu.memory_space<vmem>>, vector<16x128xf32>,
    } else {
    }
    return
  }
  func.func @transform_0(%arg0: i32, %arg1: i32) -> (i32, i32) {
    %c0_i32 = arith.constant 0 : i32
    return %arg0, %arg1 : i32, i32
  }
  func.func @transform_1(%arg0: i32, %arg1: i32) -> (i32, i32) {
    %c0_i32 = arith.constant 0 : i32
    %c0_i32_0 = arith.constant 0 : i32
    return %arg1, %c0_i32 : i32, i32
  }
  func.func @transform_2(%arg0: i32, %arg1: i32) -> (i32, i32) {
    %c0_i32 = arith.constant 0 : i32
    %c0_i32_0 = arith.constant 0 : i32
    %c0_i32_1 = arith.constant 0 : i32
    return %c0_i32, %c0_i32_0 : i32, i32
  }
  func.func @transform_3(%arg0: i32, %arg1: i32) -> (i32, i32) {
    %c0_i32 = arith.constant 0 : i32
    %c0_i32_0 = arith.constant 0 : i32
    %c0_i32_1 = arith.constant 0 : i32
    return %c0_i32, %c0_i32_0 : i32, i32
  }
  func.func @transform_4(%arg0: i32, %arg1: i32) -> (i32, i32) {
    %c0_i32 = arith.constant 0 : i32
    %c0_i32_0 = arith.constant 0 : i32
    %c0_i32_1 = arith.constant 0 : i32
    return %c0_i32, %c0_i32_0 : i32, i32
  }
  func.func @transform_5(%arg0: i32, %arg1: i32) -> (i32, i32) {
    %c0_i32 = arith.constant 0 : i32
    %c0_i32_0 = arith.constant 0 : i32
    %c0_i32_1 = arith.constant 0 : i32
    return %c0_i32, %c0_i32_0 : i32, i32
  }
  func.func @transform_6(%arg0: i32, %arg1: i32) -> (i32, i32) {
    %c0_i32 = arith.constant 0 : i32
    %c0_i32_0 = arith.constant 0 : i32
    %c0_i32_1 = arith.constant 0 : i32
    return %c0_i32, %c0_i32_0 : i32, i32
  }
  func.func @transform_7(%arg0: i32, %arg1: i32) -> (i32, i32) {
    %c0_i32 = arith.constant 0 : i32
    %c0_i32_0 = arith.constant 0 : i32
    return %arg0, %c0_i32 : i32, i32
  }
}

</mosaic_0001>

<llo_original>
// kernel: _lambda_.1
$region0: #{_lambda_.1}
  #allocation0 [shape = 'u32[]', space=smem, size = 0x4, offset = 0x4, fixed_abs, tag = 'smem constant byte address 0x4 - core index']
  #allocation1 [shape = 'u32[144,128]{1,0:T(1,128)}', space=vmem, size = 0x12000, scoped, tag = 'internal scratch']
  #allocation2 [shape = 'f32[16,128]{1,0:T(8,128)}', space=vmem, size = 0x2000, scoped, tag = 'scratch operand']
  %s0 = inlined_call_operand.vmem [shape: bf16[16,1024], index: 0, kind: input, shape index: {}]
  %s1 = inlined_call_operand.hbm [shape: bf16[1024,128], index: 1, kind: input, shape index: {}]
  %s2 = inlined_call_operand.vmem [shape: f32[1,128], index: 2, kind: input, shape index: {}]
  %s3 = inlined_call_operand.vmem [shape: bf16[128,128], index: 3, kind: input, shape index: {}]
  %s4 = inlined_call_operand.vmem [shape: bf16[128,128], index: 4, kind: input, shape index: {}]
  %s5 = inlined_call_operand.vmem [shape: bf16[128,128], index: 5, kind: input, shape index: {}]
  %s6 = inlined_call_operand.vmem [shape: f32[1,128], index: 6, kind: input, shape index: {}]
  %s7 = inlined_call_operand.vmem [shape: f32[16,128], index: 7, kind: output, shape index: {}]
  %s8 = sld [smem:[#allocation0]]
  $region50: #{_lambda_.1} parent=0
    _
  %s10 = ssub.s32 1, %s8
  %s11 = scalar_select 0, %s10, %s8
  $region1: #{_lambda_.1} parent=0
    #allocation3 [shape = 'u8[262144]{0}', space=vmem, size = 0x40000, scoped, tag = 'input window, operand 1, single buffered']
    #allocation4 [shape = 's32[1]{0}', space=sflag, size = 0x4, scoped, tag = 'scoped memory for _lambda_.1']
    %12 = vsyncpa [#allocation4], 0
    // Predicated region
    $region2: #{_lambda_.1} parent=1 // pred_check
      _
    $region3: #{_lambda_.1} parent=1 // pred_check_branch
      %14 = sbr.rel (0) target = $region5
    $region4: #{_lambda_.1} parent=1 // pred_region
      _
    $region5: #{_lambda_.1} parent=1 // pred_fallthru
      _
    // Predicated region
    $region6: #{_lambda_.1} parent=1 // pred_check
      _
    $region7: #{_lambda_.1} parent=1 // pred_check_branch
      %16 = sbr.rel (0) target = $region9
    $region8: #{_lambda_.1} parent=1 // pred_region
      %s18 = ssub.s32 8192, 8192
      %19 = vsyncadd [#allocation4], %s18
      %s20 = sshll.u32 [#allocation3], 4
      %s21 = int_to_ptr.vmem [resolvable:$true] %s20
      %26 = dma.hbm_to_vmem [thread:$0]  %s1, 8192, %s21, [#allocation4], 64, 64, 4
    $region9: #{_lambda_.1} parent=1 // pred_fallthru
      _
    // Predicated region
    $region10: #{_lambda_.1} parent=1 // pred_check
      _
    $region11: #{_lambda_.1} parent=1 // pred_check_branch
      %28 = sbr.rel (0) target = $region13
    $region12: #{_lambda_.1} parent=1 // pred_region
      _
    $region13: #{_lambda_.1} parent=1 // pred_fallthru
      _
    // Predicated region
    $region14: #{_lambda_.1} parent=1 // pred_check
      _
    $region15: #{_lambda_.1} parent=1 // pred_check_branch
      %30 = sbr.rel (0) target = $region17
    $region16: #{_lambda_.1} parent=1 // pred_region
      _
    $region17: #{_lambda_.1} parent=1 // pred_fallthru
      _
    // Predicated region
    $region18: #{_lambda_.1} parent=1 // pred_check
      _
    $region19: #{_lambda_.1} parent=1 // pred_check_branch
      %32 = sbr.rel (0) target = $region21
    $region20: #{_lambda_.1} parent=1 // pred_region
      _
    $region21: #{_lambda_.1} parent=1 // pred_fallthru
      _
    // Predicated region
    $region22: #{_lambda_.1} parent=1 // pred_check
      _
    $region23: #{_lambda_.1} parent=1 // pred_check_branch
      %34 = sbr.rel (0) target = $region25
    $region24: #{_lambda_.1} parent=1 // pred_region
      _
    $region25: #{_lambda_.1} parent=1 // pred_fallthru
      _
    // Predicated region
    $region26: #{_lambda_.1} parent=1 // pred_check
      _
    $region27: #{_lambda_.1} parent=1 // pred_check_branch
      %36 = sbr.rel (0) target = $region29
    $region28: #{_lambda_.1} parent=1 // pred_region
      _
    $region29: #{_lambda_.1} parent=1 // pred_fallthru
      _
    // Predicated region
    $region30: #{_lambda_.1} parent=1 // pred_check
      _
    $region31: #{_lambda_.1} parent=1 // pred_check_branch
      %38 = sbr.rel (0) target = $region33
    $region32: #{_lambda_.1} parent=1 // pred_region
      %39 = dma.done [#allocation4], 8192
    $region33: #{_lambda_.1} parent=1 // pred_fallthru
      _
    %p41 = scmp.eq.s32.totalorder 0, 0
    // Predicated region
    $region34: #{_lambda_.1} parent=1 // pred_check
      %p42 = pneg %p41
    $region35: #{_lambda_.1} parent=1 // pred_check_branch
      %44 = sbr.rel (%p42) target = $region37
    $region36: #{_lambda_.1} parent=1 // pred_region
      %45 = vst [vmem:[#allocation2] sm:$0xff] 0.0
      %46 = vst [vmem:[#allocation2 + $0x8] sm:$0xff] 0.0
    $region37: #{_lambda_.1} parent=1 // pred_fallthru
      _
    %v47 = vld [vmem:[#allocation2] sm:$0xff]
    %v48 = vld [vmem:[#allocation2 + $0x8] sm:$0xff]
    %v49 = vld [vmem:[%s0] sm:$0xff]
    %v50 = vld [vmem:[%s0 + $0x8] sm:$0xff]
    %v51 = vld [vmem:[%s0 + $0x10] sm:$0xff]
    %v52 = vld [vmem:[%s0 + $0x18] sm:$0xff]
    %v53 = vld [vmem:[%s0 + $0x20] sm:$0xff]
    %v54 = vld [vmem:[%s0 + $0x28] sm:$0xff]
    %v55 = vld [vmem:[%s0 + $0x30] sm:$0xff]
    %v56 = vld [vmem:[%s0 + $0x38] sm:$0xff]
    %v57 = vld [vmem:[#allocation3] sm:$0xf]
    %v58 = vld [vmem:[#allocation3 + $0x4] sm:$0xf]
    %v59 = vld [vmem:[#allocation3 + $0x8] sm:$0xf]
    %v60 = vld [vmem:[#allocation3 + $0xc] sm:$0xf]
    %v61 = vld [vmem:[#allocation3 + $0x10] sm:$0xf]
    %v62 = vld [vmem:[#allocation3 + $0x14] sm:$0xf]
    %v63 = vld [vmem:[#allocation3 + $0x18] sm:$0xf]
    %v64 = vld [vmem:[#allocation3 + $0x1c] sm:$0xf]
    %v65 = vld [vmem:[#allocation3 + $0x20] sm:$0xf]
    %v66 = vld [vmem:[#allocation3 + $0x24] sm:$0xf]
    %v67 = vld [vmem:[#allocation3 + $0x28] sm:$0xf]
    %v68 = vld [vmem:[#allocation3 + $0x2c] sm:$0xf]
    %v69 = vld [vmem:[#allocation3 + $0x30] sm:$0xf]
    %v70 = vld [vmem:[#allocation3 + $0x34] sm:$0xf]
    %v71 = vld [vmem:[#allocation3 + $0x38] sm:$0xf]
    %v72 = vld [vmem:[#allocation3 + $0x3c] sm:$0xf]
    %v73 = vld [vmem:[#allocation3 + $0x40] sm:$0xf]
    %v74 = vld [vmem:[#allocation3 + $0x44] sm:$0xf]
    %v75 = vld [vmem:[#allocation3 + $0x48] sm:$0xf]
    %v76 = vld [vmem:[#allocation3 + $0x4c] sm:$0xf]
    %v77 = vld [vmem:[#allocation3 + $0x50] sm:$0xf]
    %v78 = vld [vmem:[#allocation3 + $0x54] sm:$0xf]
    %v79 = vld [vmem:[#allocation3 + $0x58] sm:$0xf]
    %v80 = vld [vmem:[#allocation3 + $0x5c] sm:$0xf]
    %v81 = vld [vmem:[#allocation3 + $0x60] sm:$0xf]
    %v82 = vld [vmem:[#allocation3 + $0x64] sm:$0xf]
    %v83 = vld [vmem:[#allocation3 + $0x68] sm:$0xf]
    %v84 = vld [vmem:[#allocation3 + $0x6c] sm:$0xf]
    %v85 = vld [vmem:[#allocation3 + $0x70] sm:$0xf]
    %v86 = vld [vmem:[#allocation3 + $0x74] sm:$0xf]
    %v87 = vld [vmem:[#allocation3 + $0x78] sm:$0xf]
    %v88 = vld [vmem:[#allocation3 + $0x7c] sm:$0xf]
    %v89 = vld [vmem:[#allocation3 + $0x80] sm:$0xf]
    %v90 = vld [vmem:[#allocation3 + $0x84] sm:$0xf]
    %v91 = vld [vmem:[#allocation3 + $0x88] sm:$0xf]
    %v92 = vld [vmem:[#allocation3 + $0x8c] sm:$0xf]
    %v93 = vld [vmem:[#allocation3 + $0x90] sm:$0xf]
    %v94 = vld [vmem:[#allocation3 + $0x94] sm:$0xf]
    %v95 = vld [vmem:[#allocation3 + $0x98] sm:$0xf]
    %v96 = vld [vmem:[#allocation3 + $0x9c] sm:$0xf]
    %v97 = vld [vmem:[#allocation3 + $0xa0] sm:$0xf]
    %v98 = vld [vmem:[#allocation3 + $0xa4] sm:$0xf]
    %v99 = vld [vmem:[#allocation3 + $0xa8] sm:$0xf]
    %v100 = vld [vmem:[#allocation3 + $0xac] sm:$0xf]
    %v101 = vld [vmem:[#allocation3 + $0xb0] sm:$0xf]
    %v102 = vld [vmem:[#allocation3 + $0xb4] sm:$0xf]
    %v103 = vld [vmem:[#allocation3 + $0xb8] sm:$0xf]
    %v104 = vld [vmem:[#allocation3 + $0xbc] sm:$0xf]
    %v105 = vld [vmem:[#allocation3 + $0xc0] sm:$0xf]
    %v106 = vld [vmem:[#allocation3 + $0xc4] sm:$0xf]
    %v107 = vld [vmem:[#allocation3 + $0xc8] sm:$0xf]
    %v108 = vld [vmem:[#allocation3 + $0xcc] sm:$0xf]
    %v109 = vld [vmem:[#allocation3 + $0xd0] sm:$0xf]
    %v110 = vld [vmem:[#allocation3 + $0xd4] sm:$0xf]
    %v111 = vld [vmem:[#allocation3 + $0xd8] sm:$0xf]
    %v112 = vld [vmem:[#allocation3 + $0xdc] sm:$0xf]
    %v113 = vld [vmem:[#allocation3 + $0xe0] sm:$0xf]
    %v114 = vld [vmem:[#allocation3 + $0xe4] sm:$0xf]
    %v115 = vld [vmem:[#allocation3 + $0xe8] sm:$0xf]
    %v116 = vld [vmem:[#allocation3 + $0xec] sm:$0xf]
    %v117 = vld [vmem:[#allocation3 + $0xf0] sm:$0xf]
    %v118 = vld [vmem:[#allocation3 + $0xf4] sm:$0xf]
    %v119 = vld [vmem:[#allocation3 + $0xf8] sm:$0xf]
    %v120 = vld [vmem:[#allocation3 + $0xfc] sm:$0xf]
    %v121 = vld [vmem:[#allocation3 + $0x100] sm:$0xf]
    %v122 = vld [vmem:[#allocation3 + $0x104] sm:$0xf]
    %v123 = vld [vmem:[#allocation3 + $0x108] sm:$0xf]
    %v124 = vld [vmem:[#allocation3 + $0x10c] sm:$0xf]
    %v125 = vld [vmem:[#allocation3 + $0x110] sm:$0xf]
    %v126 = vld [vmem:[#allocation3 + $0x114] sm:$0xf]
    %v127 = vld [vmem:[#allocation3 + $0x118] sm:$0xf]
    %v128 = vld [vmem:[#allocation3 + $0x11c] sm:$0xf]
    %v129 = vld [vmem:[#allocation3 + $0x120] sm:$0xf]
    %v130 = vld [vmem:[#allocation3 + $0x124] sm:$0xf]
    %v131 = vld [vmem:[#allocation3 + $0x128] sm:$0xf]
    %v132 = vld [vmem:[#allocation3 + $0x12c] sm:$0xf]
    %v133 = vld [vmem:[#allocation3 + $0x130] sm:$0xf]
    %v134 = vld [vmem:[#allocation3 + $0x134] sm:$0xf]
    %v135 = vld [vmem:[#allocation3 + $0x138] sm:$0xf]
    %v136 = vld [vmem:[#allocation3 + $0x13c] sm:$0xf]
    %v137 = vld [vmem:[#allocation3 + $0x140] sm:$0xf]
    %v138 = vld [vmem:[#allocation3 + $0x144] sm:$0xf]
    %v139 = vld [vmem:[#allocation3 + $0x148] sm:$0xf]
    %v140 = vld [vmem:[#allocation3 + $0x14c] sm:$0xf]
    %v141 = vld [vmem:[#allocation3 + $0x150] sm:$0xf]
    %v142 = vld [vmem:[#allocation3 + $0x154] sm:$0xf]
    %v143 = vld [vmem:[#allocation3 + $0x158] sm:$0xf]
    %v144 = vld [vmem:[#allocation3 + $0x15c] sm:$0xf]
    %v145 = vld [vmem:[#allocation3 + $0x160] sm:$0xf]
    %v146 = vld [vmem:[#allocation3 + $0x164] sm:$0xf]
    %v147 = vld [vmem:[#allocation3 + $0x168] sm:$0xf]
    %v148 = vld [vmem:[#allocation3 + $0x16c] sm:$0xf]
    %v149 = vld [vmem:[#allocation3 + $0x170] sm:$0xf]
    %v150 = vld [vmem:[#allocation3 + $0x174] sm:$0xf]
    %v151 = vld [vmem:[#allocation3 + $0x178] sm:$0xf]
    %v152 = vld [vmem:[#allocation3 + $0x17c] sm:$0xf]
    %v153 = vld [vmem:[#allocation3 + $0x180] sm:$0xf]
    %v154 = vld [vmem:[#allocation3 + $0x184] sm:$0xf]
    %v155 = vld [vmem:[#allocation3 + $0x188] sm:$0xf]
    %v156 = vld [vmem:[#allocation3 + $0x18c] sm:$0xf]
    %v157 = vld [vmem:[#allocation3 + $0x190] sm:$0xf]
    %v158 = vld [vmem:[#allocation3 + $0x194] sm:$0xf]
    %v159 = vld [vmem:[#allocation3 + $0x198] sm:$0xf]
    %v160 = vld [vmem:[#allocation3 + $0x19c] sm:$0xf]
    %v161 = vld [vmem:[#allocation3 + $0x1a0] sm:$0xf]
    %v162 = vld [vmem:[#allocation3 + $0x1a4] sm:$0xf]
    %v163 = vld [vmem:[#allocation3 + $0x1a8] sm:$0xf]
    %v164 = vld [vmem:[#allocation3 + $0x1ac] sm:$0xf]
    %v165 = vld [vmem:[#allocation3 + $0x1b0] sm:$0xf]
    %v166 = vld [vmem:[#allocation3 + $0x1b4] sm:$0xf]
    %v167 = vld [vmem:[#allocation3 + $0x1b8] sm:$0xf]
    %v168 = vld [vmem:[#allocation3 + $0x1bc] sm:$0xf]
    %v169 = vld [vmem:[#allocation3 + $0x1c0] sm:$0xf]
    %v170 = vld [vmem:[#allocation3 + $0x1c4] sm:$0xf]
    %v171 = vld [vmem:[#allocation3 + $0x1c8] sm:$0xf]
    %v172 = vld [vmem:[#allocation3 + $0x1cc] sm:$0xf]
    %v173 = vld [vmem:[#allocation3 + $0x1d0] sm:$0xf]
    %v174 = vld [vmem:[#allocation3 + $0x1d4] sm:$0xf]
    %v175 = vld [vmem:[#allocation3 + $0x1d8] sm:$0xf]
    %v176 = vld [vmem:[#allocation3 + $0x1dc] sm:$0xf]
    %v177 = vld [vmem:[#allocation3 + $0x1e0] sm:$0xf]
    %v178 = vld [vmem:[#allocation3 + $0x1e4] sm:$0xf]
    %v179 = vld [vmem:[#allocation3 + $0x1e8] sm:$0xf]
    %v180 = vld [vmem:[#allocation3 + $0x1ec] sm:$0xf]
    %v181 = vld [vmem:[#allocation3 + $0x1f0] sm:$0xf]
    %v182 = vld [vmem:[#allocation3 + $0x1f4] sm:$0xf]
    %v183 = vld [vmem:[#allocation3 + $0x1f8] sm:$0xf]
    %v184 = vld [vmem:[#allocation3 + $0x1fc] sm:$0xf]
    %v193 = vunpack.c.l.b16 %v49
    %v194 = vunpack.c.h.b16 %v49
    %v195 = vunpack.c.l.b16 %v50
    %v196 = vunpack.c.h.b16 %v50
    %v197 = vunpack.c.l.b16 %v51
    %v198 = vunpack.c.h.b16 %v51
    %v199 = vunpack.c.l.b16 %v52
    %v200 = vunpack.c.h.b16 %v52
    %v201 = vunpack.c.l.b16 %v53
    %v202 = vunpack.c.h.b16 %v53
    %v203 = vunpack.c.l.b16 %v54
    %v204 = vunpack.c.h.b16 %v54
    %v205 = vunpack.c.l.b16 %v55
    %v206 = vunpack.c.h.b16 %v55
    %v207 = vunpack.c.l.b16 %v56
    %v208 = vunpack.c.h.b16 %v56
    %v209 = vpack.c.b16 %v201, %v193
    %v210 = vpack.c.b16 %v202, %v194
    %v211 = vpack.c.b16 %v203, %v195
    %v212 = vpack.c.b16 %v204, %v196
    %v213 = vpack.c.b16 %v205, %v197
    %v214 = vpack.c.b16 %v206, %v198
    %v215 = vpack.c.b16 %v207, %v199
    %v216 = vpack.c.b16 %v208, %v200
    %v353 = vunpack.c.l.b16 %v57
    %v354 = vunpack.c.l.b16 %v58
    %v355 = vunpack.c.l.b16 %v59
    %v356 = vunpack.c.l.b16 %v60
    %v357 = vunpack.c.l.b16 %v61
    %v358 = vunpack.c.l.b16 %v62
    %v359 = vunpack.c.l.b16 %v63
    %v360 = vunpack.c.l.b16 %v64
    %v361 = vunpack.c.l.b16 %v65
    %v362 = vunpack.c.l.b16 %v66
    %v363 = vunpack.c.l.b16 %v67
    %v364 = vunpack.c.l.b16 %v68
    %v365 = vunpack.c.l.b16 %v69
    %v366 = vunpack.c.l.b16 %v70
    %v367 = vunpack.c.l.b16 %v71
    %v368 = vunpack.c.l.b16 %v72
    %v369 = vunpack.c.l.b16 %v73
    %v370 = vunpack.c.l.b16 %v74
    %v371 = vunpack.c.l.b16 %v75
    %v372 = vunpack.c.l.b16 %v76
    %v373 = vunpack.c.l.b16 %v77
    %v374 = vunpack.c.l.b16 %v78
    %v375 = vunpack.c.l.b16 %v79
    %v376 = vunpack.c.l.b16 %v80
    %v377 = vunpack.c.l.b16 %v81
    %v378 = vunpack.c.l.b16 %v82
    %v379 = vunpack.c.l.b16 %v83
    %v380 = vunpack.c.l.b16 %v84
    %v381 = vunpack.c.l.b16 %v85
    %v382 = vunpack.c.l.b16 %v86
    %v383 = vunpack.c.l.b16 %v87
    %v384 = vunpack.c.l.b16 %v88
    %v385 = vunpack.c.l.b16 %v89
    %v386 = vunpack.c.l.b16 %v90
    %v387 = vunpack.c.l.b16 %v91
    %v388 = vunpack.c.l.b16 %v92
    %v389 = vunpack.c.l.b16 %v93
    %v390 = vunpack.c.l.b16 %v94
    %v391 = vunpack.c.l.b16 %v95
    %v392 = vunpack.c.l.b16 %v96
    %v393 = vunpack.c.l.b16 %v97
    %v394 = vunpack.c.l.b16 %v98
    %v395 = vunpack.c.l.b16 %v99
    %v396 = vunpack.c.l.b16 %v100
    %v397 = vunpack.c.l.b16 %v101
    %v398 = vunpack.c.l.b16 %v102
    %v399 = vunpack.c.l.b16 %v103
    %v400 = vunpack.c.l.b16 %v104
    %v401 = vunpack.c.l.b16 %v105
    %v402 = vunpack.c.l.b16 %v106
    %v403 = vunpack.c.l.b16 %v107
    %v404 = vunpack.c.l.b16 %v108
    %v405 = vunpack.c.l.b16 %v109
    %v406 = vunpack.c.l.b16 %v110
    %v407 = vunpack.c.l.b16 %v111
    %v408 = vunpack.c.l.b16 %v112
    %v409 = vunpack.c.l.b16 %v113
    %v410 = vunpack.c.l.b16 %v114
    %v411 = vunpack.c.l.b16 %v115
    %v412 = vunpack.c.l.b16 %v116
    %v413 = vunpack.c.l.b16 %v117
    %v414 = vunpack.c.l.b16 %v118
    %v415 = vunpack.c.l.b16 %v119
    %v416 = vunpack.c.l.b16 %v120
    %v417 = vunpack.c.l.b16 %v121
    %v418 = vunpack.c.l.b16 %v122
    %v419 = vunpack.c.l.b16 %v123
    %v420 = vunpack.c.l.b16 %v124
    %v421 = vunpack.c.l.b16 %v125
    %v422 = vunpack.c.l.b16 %v126
    %v423 = vunpack.c.l.b16 %v127
    %v424 = vunpack.c.l.b16 %v128
    %v425 = vunpack.c.l.b16 %v129
    %v426 = vunpack.c.l.b16 %v130
    %v427 = vunpack.c.l.b16 %v131
    %v428 = vunpack.c.l.b16 %v132
    %v429 = vunpack.c.l.b16 %v133
    %v430 = vunpack.c.l.b16 %v134
    %v431 = vunpack.c.l.b16 %v135
    %v432 = vunpack.c.l.b16 %v136
    %v433 = vunpack.c.l.b16 %v137
    %v434 = vunpack.c.l.b16 %v138
    %v435 = vunpack.c.l.b16 %v139
    %v436 = vunpack.c.l.b16 %v140
    %v437 = vunpack.c.l.b16 %v141
    %v438 = vunpack.c.l.b16 %v142
    %v439 = vunpack.c.l.b16 %v143
    %v440 = vunpack.c.l.b16 %v144
    %v441 = vunpack.c.l.b16 %v145
    %v442 = vunpack.c.l.b16 %v146
    %v443 = vunpack.c.l.b16 %v147
    %v444 = vunpack.c.l.b16 %v148
    %v445 = vunpack.c.l.b16 %v149
    %v446 = vunpack.c.l.b16 %v150
    %v447 = vunpack.c.l.b16 %v151
    %v448 = vunpack.c.l.b16 %v152
    %v449 = vunpack.c.l.b16 %v153
    %v450 = vunpack.c.l.b16 %v154
    %v451 = vunpack.c.l.b16 %v155
    %v452 = vunpack.c.l.b16 %v156
    %v453 = vunpack.c.l.b16 %v157
    %v454 = vunpack.c.l.b16 %v158
    %v455 = vunpack.c.l.b16 %v159
    %v456 = vunpack.c.l.b16 %v160
    %v457 = vunpack.c.l.b16 %v161
    %v458 = vunpack.c.l.b16 %v162
    %v459 = vunpack.c.l.b16 %v163
    %v460 = vunpack.c.l.b16 %v164
    %v461 = vunpack.c.l.b16 %v165
    %v462 = vunpack.c.l.b16 %v166
    %v463 = vunpack.c.l.b16 %v167
    %v464 = vunpack.c.l.b16 %v168
    %v465 = vunpack.c.l.b16 %v169
    %v466 = vunpack.c.l.b16 %v170
    %v467 = vunpack.c.l.b16 %v171
    %v468 = vunpack.c.l.b16 %v172
    %v469 = vunpack.c.l.b16 %v173
    %v470 = vunpack.c.l.b16 %v174
    %v471 = vunpack.c.l.b16 %v175
    %v472 = vunpack.c.l.b16 %v176
    %v473 = vunpack.c.l.b16 %v177
    %v474 = vunpack.c.l.b16 %v178
    %v475 = vunpack.c.l.b16 %v179
    %v476 = vunpack.c.l.b16 %v180
    %v477 = vunpack.c.l.b16 %v181
    %v478 = vunpack.c.l.b16 %v182
    %v479 = vunpack.c.l.b16 %v183
    %v480 = vunpack.c.l.b16 %v184
    %v481 = vpack.c.b16 %v354, %v353
    %v482 = vpack.c.b16 %v356, %v355
    %v483 = vpack.c.b16 %v358, %v357
    %v484 = vpack.c.b16 %v360, %v359
    %v485 = vpack.c.b16 %v362, %v361
    %v486 = vpack.c.b16 %v364, %v363
    %v487 = vpack.c.b16 %v366, %v365
    %v488 = vpack.c.b16 %v368, %v367
    %v489 = vpack.c.b16 %v370, %v369
    %v490 = vpack.c.b16 %v372, %v371
    %v491 = vpack.c.b16 %v374, %v373
    %v492 = vpack.c.b16 %v376, %v375
    %v493 = vpack.c.b16 %v378, %v377
    %v494 = vpack.c.b16 %v380, %v379
    %v495 = vpack.c.b16 %v382, %v381
    %v496 = vpack.c.b16 %v384, %v383
    %v497 = vpack.c.b16 %v386, %v385
    %v498 = vpack.c.b16 %v388, %v387
    %v499 = vpack.c.b16 %v390, %v389
    %v500 = vpack.c.b16 %v392, %v391
    %v501 = vpack.c.b16 %v394, %v393
    %v502 = vpack.c.b16 %v396, %v395
    %v503 = vpack.c.b16 %v398, %v397
    %v504 = vpack.c.b16 %v400, %v399
    %v505 = vpack.c.b16 %v402, %v401
    %v506 = vpack.c.b16 %v404, %v403
    %v507 = vpack.c.b16 %v406, %v405
    %v508 = vpack.c.b16 %v408, %v407
    %v509 = vpack.c.b16 %v410, %v409
    %v510 = vpack.c.b16 %v412, %v411
    %v511 = vpack.c.b16 %v414, %v413
    %v512 = vpack.c.b16 %v416, %v415
    %v513 = vpack.c.b16 %v418, %v417
    %v514 = vpack.c.b16 %v420, %v419
    %v515 = vpack.c.b16 %v422, %v421
    %v516 = vpack.c.b16 %v424, %v423
    %v517 = vpack.c.b16 %v426, %v425
    %v518 = vpack.c.b16 %v428, %v427
    %v519 = vpack.c.b16 %v430, %v429
    %v520 = vpack.c.b16 %v432, %v431
    %v521 = vpack.c.b16 %v434, %v433
    %v522 = vpack.c.b16 %v436, %v435
    %v523 = vpack.c.b16 %v438, %v437
    %v524 = vpack.c.b16 %v440, %v439
    %v525 = vpack.c.b16 %v442, %v441
    %v526 = vpack.c.b16 %v444, %v443
    %v527 = vpack.c.b16 %v446, %v445
    %v528 = vpack.c.b16 %v448, %v447
    %v529 = vpack.c.b16 %v450, %v449
    %v530 = vpack.c.b16 %v452, %v451
    %v531 = vpack.c.b16 %v454, %v453
    %v532 = vpack.c.b16 %v456, %v455
    %v533 = vpack.c.b16 %v458, %v457
    %v534 = vpack.c.b16 %v460, %v459
    %v535 = vpack.c.b16 %v462, %v461
    %v536 = vpack.c.b16 %v464, %v463
    %v537 = vpack.c.b16 %v466, %v465
    %v538 = vpack.c.b16 %v468, %v467
    %v539 = vpack.c.b16 %v470, %v469
    %v540 = vpack.c.b16 %v472, %v471
    %v541 = vpack.c.b16 %v474, %v473
    %v542 = vpack.c.b16 %v476, %v475
    %v543 = vpack.c.b16 %v478, %v477
    %v544 = vpack.c.b16 %v480, %v479
    %609 = vmatprep.subr.bf16.mxu0 0
    %610 = vmatpush1.bf16.msra.mxu0 %v481
    %611 = vmatprep.subr.bf16.mxu0 0
    %612 = vmatpush1.bf16.msra.mxu0 %v482
    %613 = vmatprep.subr.bf16.mxu0 0
    %614 = vmatpush1.bf16.msra.mxu0 %v483
    %615 = vmatprep.subr.bf16.mxu0 0
    %616 = vmatpush1.bf16.msra.mxu0 %v484
    %617 = vmatprep.subr.bf16.mxu0 0
    %618 = vmatpush1.bf16.msra.mxu0 %v485
    %619 = vmatprep.subr.bf16.mxu0 0
    %620 = vmatpush1.bf16.msra.mxu0 %v486
    %621 = vmatprep.subr.bf16.mxu0 0
    %622 = vmatpush1.bf16.msra.mxu0 %v487
    %623 = vmatprep.subr.bf16.mxu0 0
    %624 = vmatpush1.bf16.msra.mxu0 %v488
    %625 = vmatprep.subr.bf16.mxu0 0
    %626 = vmatpush1.bf16.msra.mxu0 %v489
    %627 = vmatprep.subr.bf16.mxu0 0
    %628 = vmatpush1.bf16.msra.mxu0 %v490
    %629 = vmatprep.subr.bf16.mxu0 0
    %630 = vmatpush1.bf16.msra.mxu0 %v491
    %631 = vmatprep.subr.bf16.mxu0 0
    %632 = vmatpush1.bf16.msra.mxu0 %v492
    %633 = vmatprep.subr.bf16.mxu0 0
    %634 = vmatpush1.bf16.msra.mxu0 %v493
    %635 = vmatprep.subr.bf16.mxu0 0
    %636 = vmatpush1.bf16.msra.mxu0 %v494
    %637 = vmatprep.subr.bf16.mxu0 0
    %638 = vmatpush1.bf16.msra.mxu0 %v495
    %639 = vmatprep.subr.bf16.mxu0 0
    %640 = vmatpush1.bf16.msra.mxu0 %v496
    %641 = vmatprep.mubr.bf16.mxu0 %v210
    %642 = vmatmul.mubr.bf16.gmra.mrb[0].mxu0 %v209
    %v643 = vpop.f32.mrb[0].mxu0
    %v644 = vadd.f32 0.0, %v643
    %v645 = vpop.f32.mrb[0].mxu0
    %v646 = vpop.f32.mrb[0].mxu0
    %v647 = vadd.f32 0.0, %v646
    %v648 = vpop.f32.mrb[0].mxu0
    %649 = vdwg.mxu0
    %650 = vmatprep.subr.bf16.mxu0 0
    %651 = vmatpush1.bf16.msra.mxu0 %v497
    %652 = vmatprep.subr.bf16.mxu0 0
    %653 = vmatpush1.bf16.msra.mxu0 %v498
    %654 = vmatprep.subr.bf16.mxu0 0
    %655 = vmatpush1.bf16.msra.mxu0 %v499
    %656 = vmatprep.subr.bf16.mxu0 0
    %657 = vmatpush1.bf16.msra.mxu0 %v500
    %658 = vmatprep.subr.bf16.mxu0 0
    %659 = vmatpush1.bf16.msra.mxu0 %v501
    %660 = vmatprep.subr.bf16.mxu0 0
    %661 = vmatpush1.bf16.msra.mxu0 %v502
    %662 = vmatprep.subr.bf16.mxu0 0
    %663 = vmatpush1.bf16.msra.mxu0 %v503
    %664 = vmatprep.subr.bf16.mxu0 0
    %665 = vmatpush1.bf16.msra.mxu0 %v504
    %666 = vmatprep.subr.bf16.mxu0 0
    %667 = vmatpush1.bf16.msra.mxu0 %v505
    %668 = vmatprep.subr.bf16.mxu0 0
    %669 = vmatpush1.bf16.msra.mxu0 %v506
    %670 = vmatprep.subr.bf16.mxu0 0
    %671 = vmatpush1.bf16.msra.mxu0 %v507
    %672 = vmatprep.subr.bf16.mxu0 0
    %673 = vmatpush1.bf16.msra.mxu0 %v508
    %674 = vmatprep.subr.bf16.mxu0 0
    %675 = vmatpush1.bf16.msra.mxu0 %v509
    %676 = vmatprep.subr.bf16.mxu0 0
    %677 = vmatpush1.bf16.msra.mxu0 %v510
    %678 = vmatprep.subr.bf16.mxu0 0
    %679 = vmatpush1.bf16.msra.mxu0 %v511
    %680 = vmatprep.subr.bf16.mxu0 0
    %681 = vmatpush1.bf16.msra.mxu0 %v512
    %682 = vmatprep.mubr.bf16.mxu0 %v212
    %683 = vmatmul.mubr.bf16.gmra.mrb[0].mxu0 %v211
    %v684 = vpop.f32.mrb[0].mxu0
    %v685 = vadd.f32 %v644, %v684
    %v686 = vpop.f32.mrb[0].mxu0
    %v687 = vpop.f32.mrb[0].mxu0
    %v688 = vadd.f32 %v647, %v687
    %v689 = vpop.f32.mrb[0].mxu0
    %690 = vdwg.mxu0
    %691 = vmatprep.subr.bf16.mxu0 0
    %692 = vmatpush1.bf16.msra.mxu0 %v513
    %693 = vmatprep.subr.bf16.mxu0 0
    %694 = vmatpush1.bf16.msra.mxu0 %v514
    %695 = vmatprep.subr.bf16.mxu0 0
    %696 = vmatpush1.bf16.msra.mxu0 %v515
    %697 = vmatprep.subr.bf16.mxu0 0
    %698 = vmatpush1.bf16.msra.mxu0 %v516
    %699 = vmatprep.subr.bf16.mxu0 0
    %700 = vmatpush1.bf16.msra.mxu0 %v517
    %701 = vmatprep.subr.bf16.mxu0 0
    %702 = vmatpush1.bf16.msra.mxu0 %v518
    %703 = vmatprep.subr.bf16.mxu0 0
    %704 = vmatpush1.bf16.msra.mxu0 %v519
    %705 = vmatprep.subr.bf16.mxu0 0
    %706 = vmatpush1.bf16.msra.mxu0 %v520
    %707 = vmatprep.subr.bf16.mxu0 0
    %708 = vmatpush1.bf16.msra.mxu0 %v521
    %709 = vmatprep.subr.bf16.mxu0 0
    %710 = vmatpush1.bf16.msra.mxu0 %v522
    %711 = vmatprep.subr.bf16.mxu0 0
    %712 = vmatpush1.bf16.msra.mxu0 %v523
    %713 = vmatprep.subr.bf16.mxu0 0
    %714 = vmatpush1.bf16.msra.mxu0 %v524
    %715 = vmatprep.subr.bf16.mxu0 0
    %716 = vmatpush1.bf16.msra.mxu0 %v525
    %717 = vmatprep.subr.bf16.mxu0 0
    %718 = vmatpush1.bf16.msra.mxu0 %v526
    %719 = vmatprep.subr.bf16.mxu0 0
    %720 = vmatpush1.bf16.msra.mxu0 %v527
    %721 = vmatprep.subr.bf16.mxu0 0
    %722 = vmatpush1.bf16.msra.mxu0 %v528
    %723 = vmatprep.mubr.bf16.mxu0 %v214
    %724 = vmatmul.mubr.bf16.gmra.mrb[0].mxu0 %v213
    %v725 = vpop.f32.mrb[0].mxu0
    %v726 = vadd.f32 %v685, %v725
    %v727 = vpop.f32.mrb[0].mxu0
    %v728 = vpop.f32.mrb[0].mxu0
    %v729 = vadd.f32 %v688, %v728
    %v730 = vpop.f32.mrb[0].mxu0
    %731 = vdwg.mxu0
    %732 = vmatprep.subr.bf16.mxu0 0
    %733 = vmatpush1.bf16.msra.mxu0 %v529
    %734 = vmatprep.subr.bf16.mxu0 0
    %735 = vmatpush1.bf16.msra.mxu0 %v530
    %736 = vmatprep.subr.bf16.mxu0 0
    %737 = vmatpush1.bf16.msra.mxu0 %v531
    %738 = vmatprep.subr.bf16.mxu0 0
    %739 = vmatpush1.bf16.msra.mxu0 %v532
    %740 = vmatprep.subr.bf16.mxu0 0
    %741 = vmatpush1.bf16.msra.mxu0 %v533
    %742 = vmatprep.subr.bf16.mxu0 0
    %743 = vmatpush1.bf16.msra.mxu0 %v534
    %744 = vmatprep.subr.bf16.mxu0 0
    %745 = vmatpush1.bf16.msra.mxu0 %v535
    %746 = vmatprep.subr.bf16.mxu0 0
    %747 = vmatpush1.bf16.msra.mxu0 %v536
    %748 = vmatprep.subr.bf16.mxu0 0
    %749 = vmatpush1.bf16.msra.mxu0 %v537
    %750 = vmatprep.subr.bf16.mxu0 0
    %751 = vmatpush1.bf16.msra.mxu0 %v538
    %752 = vmatprep.subr.bf16.mxu0 0
    %753 = vmatpush1.bf16.msra.mxu0 %v539
    %754 = vmatprep.subr.bf16.mxu0 0
    %755 = vmatpush1.bf16.msra.mxu0 %v540
    %756 = vmatprep.subr.bf16.mxu0 0
    %757 = vmatpush1.bf16.msra.mxu0 %v541
    %758 = vmatprep.subr.bf16.mxu0 0
    %759 = vmatpush1.bf16.msra.mxu0 %v542
    %760 = vmatprep.subr.bf16.mxu0 0
    %761 = vmatpush1.bf16.msra.mxu0 %v543
    %762 = vmatprep.subr.bf16.mxu0 0
    %763 = vmatpush1.bf16.msra.mxu0 %v544
    %764 = vmatprep.mubr.bf16.mxu0 %v216
    %765 = vmatmul.mubr.bf16.gmra.mrb[0].mxu0 %v215
    %v766 = vpop.f32.mrb[0].mxu0
    %v767 = vadd.f32 %v726, %v766
    %v768 = vpop.f32.mrb[0].mxu0
    %v769 = vpop.f32.mrb[0].mxu0
    %v770 = vadd.f32 %v729, %v769
    %v771 = vpop.f32.mrb[0].mxu0
    %772 = vdwg.mxu0
    %v773 = vadd.f32 %v47, %v767
    %v774 = vadd.f32 %v48, %v770
    %775 = vst [vmem:[#allocation2] sm:$0xff] %v773
    %776 = vst [vmem:[#allocation2 + $0x8] sm:$0xff] %v774
    // Predicated region
    $region38: #{_lambda_.1} parent=1 // pred_check
      %p777 = pneg %p41
    $region39: #{_lambda_.1} parent=1 // pred_check_branch
      %779 = sbr.rel (%p777) target = $region41
    $region40: #{_lambda_.1} parent=1 // pred_region
      %v780 = vld [vmem:[#allocation2] sm:$0xff]
      %v781 = vld [vmem:[#allocation2 + $0x8] sm:$0xff]
      %v782 = vld [vmem:[%s2] sm:$0x1]
      %v784 = vlaneseq
      %v785 = vshrl.u32 %v784, 7
      %v786 = vsub.s32 0, %v785
      %v787 = vrot.slane %v782, %v786
      %v789 = vadd.f32 %v780, %v787
      %v790 = vadd.f32 %v781, %v787
      %v791 = vpack.c.bf16 %v790, %v789
      %v792 = vld [vmem:[%s3] sm:$0xf]
      %v793 = vld [vmem:[%s3 + $0x4] sm:$0xf]
      %v794 = vld [vmem:[%s3 + $0x8] sm:$0xf]
      %v795 = vld [vmem:[%s3 + $0xc] sm:$0xf]
      %v796 = vld [vmem:[%s3 + $0x10] sm:$0xf]
      %v797 = vld [vmem:[%s3 + $0x14] sm:$0xf]
      %v798 = vld [vmem:[%s3 + $0x18] sm:$0xf]
      %v799 = vld [vmem:[%s3 + $0x1c] sm:$0xf]
      %v800 = vld [vmem:[%s3 + $0x20] sm:$0xf]
      %v801 = vld [vmem:[%s3 + $0x24] sm:$0xf]
      %v802 = vld [vmem:[%s3 + $0x28] sm:$0xf]
      %v803 = vld [vmem:[%s3 + $0x2c] sm:$0xf]
      %v804 = vld [vmem:[%s3 + $0x30] sm:$0xf]
      %v805 = vld [vmem:[%s3 + $0x34] sm:$0xf]
      %v806 = vld [vmem:[%s3 + $0x38] sm:$0xf]
      %v807 = vld [vmem:[%s3 + $0x3c] sm:$0xf]
      %v824 = vunpack.c.l.b16 %v792
      %v825 = vunpack.c.l.b16 %v793
      %v826 = vunpack.c.l.b16 %v794
      %v827 = vunpack.c.l.b16 %v795
      %v828 = vunpack.c.l.b16 %v796
      %v829 = vunpack.c.l.b16 %v797
      %v830 = vunpack.c.l.b16 %v798
      %v831 = vunpack.c.l.b16 %v799
      %v832 = vunpack.c.l.b16 %v800
      %v833 = vunpack.c.l.b16 %v801
      %v834 = vunpack.c.l.b16 %v802
      %v835 = vunpack.c.l.b16 %v803
      %v836 = vunpack.c.l.b16 %v804
      %v837 = vunpack.c.l.b16 %v805
      %v838 = vunpack.c.l.b16 %v806
      %v839 = vunpack.c.l.b16 %v807
      %v840 = vpack.c.b16 %v825, %v824
      %v841 = vpack.c.b16 %v827, %v826
      %v842 = vpack.c.b16 %v829, %v828
      %v843 = vpack.c.b16 %v831, %v830
      %v844 = vpack.c.b16 %v833, %v832
      %v845 = vpack.c.b16 %v835, %v834
      %v846 = vpack.c.b16 %v837, %v836
      %v847 = vpack.c.b16 %v839, %v838
      %856 = vmatprep.subr.bf16.mxu0 0
      %857 = vmatpush1.bf16.msra.mxu0 %v840
      %858 = vmatprep.subr.bf16.mxu0 0
      %859 = vmatpush1.bf16.msra.mxu0 %v841
      %860 = vmatprep.subr.bf16.mxu0 0
      %861 = vmatpush1.bf16.msra.mxu0 %v842
      %862 = vmatprep.subr.bf16.mxu0 0
      %863 = vmatpush1.bf16.msra.mxu0 %v843
      %864 = vmatprep.subr.bf16.mxu0 0
      %865 = vmatpush1.bf16.msra.mxu0 %v844
      %866 = vmatprep.subr.bf16.mxu0 0
      %867 = vmatpush1.bf16.msra.mxu0 %v845
      %868 = vmatprep.subr.bf16.mxu0 0
      %869 = vmatpush1.bf16.msra.mxu0 %v846
      %870 = vmatprep.subr.bf16.mxu0 0
      %871 = vmatpush1.bf16.msra.mxu0 %v847
      %872 = vmatprep.subr.bf16.mxu0 0
      %873 = vmatpush1.bf16.msra.mxu0 0
      %874 = vmatprep.subr.bf16.mxu0 0
      %875 = vmatpush1.bf16.msra.mxu0 0
      %876 = vmatprep.subr.bf16.mxu0 0
      %877 = vmatpush1.bf16.msra.mxu0 0
      %878 = vmatprep.subr.bf16.mxu0 0
      %879 = vmatpush1.bf16.msra.mxu0 0
      %880 = vmatprep.subr.bf16.mxu0 0
      %881 = vmatpush1.bf16.msra.mxu0 0
      %882 = vmatprep.subr.bf16.mxu0 0
      %883 = vmatpush1.bf16.msra.mxu0 0
      %884 = vmatprep.subr.bf16.mxu0 0
      %885 = vmatpush1.bf16.msra.mxu0 0
      %886 = vmatprep.subr.bf16.mxu0 0
      %887 = vmatpush1.bf16.msra.mxu0 0
      %888 = vmatprep.mubr.bf16.mxu0 0
      %889 = vmatmul.mubr.bf16.gmra.mrb[0].mxu0 %v791
      %v890 = vpop.f32.mrb[0].mxu0
      %v891 = vadd.f32 0.0, %v890
      %v892 = vpop.f32.mrb[0].mxu0
      %v893 = vpop.f32.mrb[0].mxu0
      %v894 = vadd.f32 0.0, %v893
      %v895 = vpop.f32.mrb[0].mxu0
      %896 = vdwg.mxu0
      %v897 = vmax.f32 %v891, 0.0
      %v898 = vmax.f32 %v894, 0.0
      %v899 = vpack.c.bf16 %v898, %v897
      %v900 = vld [vmem:[%s4] sm:$0xf]
      %v901 = vld [vmem:[%s4 + $0x4] sm:$0xf]
      %v902 = vld [vmem:[%s4 + $0x8] sm:$0xf]
      %v903 = vld [vmem:[%s4 + $0xc] sm:$0xf]
      %v904 = vld [vmem:[%s4 + $0x10] sm:$0xf]
      %v905 = vld [vmem:[%s4 + $0x14] sm:$0xf]
      %v906 = vld [vmem:[%s4 + $0x18] sm:$0xf]
      %v907 = vld [vmem:[%s4 + $0x1c] sm:$0xf]
      %v908 = vld [vmem:[%s4 + $0x20] sm:$0xf]
      %v909 = vld [vmem:[%s4 + $0x24] sm:$0xf]
      %v910 = vld [vmem:[%s4 + $0x28] sm:$0xf]
      %v911 = vld [vmem:[%s4 + $0x2c] sm:$0xf]
      %v912 = vld [vmem:[%s4 + $0x30] sm:$0xf]
      %v913 = vld [vmem:[%s4 + $0x34] sm:$0xf]
      %v914 = vld [vmem:[%s4 + $0x38] sm:$0xf]
      %v915 = vld [vmem:[%s4 + $0x3c] sm:$0xf]
      %v932 = vunpack.c.l.b16 %v900
      %v933 = vunpack.c.l.b16 %v901
      %v934 = vunpack.c.l.b16 %v902
      %v935 = vunpack.c.l.b16 %v903
      %v936 = vunpack.c.l.b16 %v904
      %v937 = vunpack.c.l.b16 %v905
      %v938 = vunpack.c.l.b16 %v906
      %v939 = vunpack.c.l.b16 %v907
      %v940 = vunpack.c.l.b16 %v908
      %v941 = vunpack.c.l.b16 %v909
      %v942 = vunpack.c.l.b16 %v910
      %v943 = vunpack.c.l.b16 %v911
      %v944 = vunpack.c.l.b16 %v912
      %v945 = vunpack.c.l.b16 %v913
      %v946 = vunpack.c.l.b16 %v914
      %v947 = vunpack.c.l.b16 %v915
      %v948 = vpack.c.b16 %v933, %v932
      %v949 = vpack.c.b16 %v935, %v934
      %v950 = vpack.c.b16 %v937, %v936
      %v951 = vpack.c.b16 %v939, %v938
      %v952 = vpack.c.b16 %v941, %v940
      %v953 = vpack.c.b16 %v943, %v942
      %v954 = vpack.c.b16 %v945, %v944
      %v955 = vpack.c.b16 %v947, %v946
      %964 = vmatprep.subr.bf16.mxu0 0
      %965 = vmatpush1.bf16.msra.mxu0 %v948
      %966 = vmatprep.subr.bf16.mxu0 0
      %967 = vmatpush1.bf16.msra.mxu0 %v949
      %968 = vmatprep.subr.bf16.mxu0 0
      %969 = vmatpush1.bf16.msra.mxu0 %v950
      %970 = vmatprep.subr.bf16.mxu0 0
      %971 = vmatpush1.bf16.msra.mxu0 %v951
      %972 = vmatprep.subr.bf16.mxu0 0
      %973 = vmatpush1.bf16.msra.mxu0 %v952
      %974 = vmatprep.subr.bf16.mxu0 0
      %975 = vmatpush1.bf16.msra.mxu0 %v953
      %976 = vmatprep.subr.bf16.mxu0 0
      %977 = vmatpush1.bf16.msra.mxu0 %v954
      %978 = vmatprep.subr.bf16.mxu0 0
      %979 = vmatpush1.bf16.msra.mxu0 %v955
      %980 = vmatprep.subr.bf16.mxu0 0
      %981 = vmatpush1.bf16.msra.mxu0 0
      %982 = vmatprep.subr.bf16.mxu0 0
      %983 = vmatpush1.bf16.msra.mxu0 0
      %984 = vmatprep.subr.bf16.mxu0 0
      %985 = vmatpush1.bf16.msra.mxu0 0
      %986 = vmatprep.subr.bf16.mxu0 0
      %987 = vmatpush1.bf16.msra.mxu0 0
      %988 = vmatprep.subr.bf16.mxu0 0
      %989 = vmatpush1.bf16.msra.mxu0 0
      %990 = vmatprep.subr.bf16.mxu0 0
      %991 = vmatpush1.bf16.msra.mxu0 0
      %992 = vmatprep.subr.bf16.mxu0 0
      %993 = vmatpush1.bf16.msra.mxu0 0
      %994 = vmatprep.subr.bf16.mxu0 0
      %995 = vmatpush1.bf16.msra.mxu0 0
      %996 = vmatprep.mubr.bf16.mxu0 0
      %997 = vmatmul.mubr.bf16.gmra.mrb[0].mxu0 %v899
      %v998 = vpop.f32.mrb[0].mxu0
      %v999 = vadd.f32 0.0, %v998
      %v1000 = vpop.f32.mrb[0].mxu0
      %v1001 = vpop.f32.mrb[0].mxu0
      %v1002 = vadd.f32 0.0, %v1001
      %v1003 = vpop.f32.mrb[0].mxu0
      %1004 = vdwg.mxu0
      %v1005 = vsub.f32 %v789, %v999
      %v1006 = vsub.f32 %v790, %v1002
      %v1007 = vpack.c.bf16 %v1006, %v1005
      %v1008 = vld [vmem:[%s5] sm:$0xf]
      %v1009 = vld [vmem:[%s5 + $0x4] sm:$0xf]
      %v1010 = vld [vmem:[%s5 + $0x8] sm:$0xf]
      %v1011 = vld [vmem:[%s5 + $0xc] sm:$0xf]
      %v1012 = vld [vmem:[%s5 + $0x10] sm:$0xf]
      %v1013 = vld [vmem:[%s5 + $0x14] sm:$0xf]
      %v1014 = vld [vmem:[%s5 + $0x18] sm:$0xf]
      %v1015 = vld [vmem:[%s5 + $0x1c] sm:$0xf]
      %v1016 = vld [vmem:[%s5 + $0x20] sm:$0xf]
      %v1017 = vld [vmem:[%s5 + $0x24] sm:$0xf]
      %v1018 = vld [vmem:[%s5 + $0x28] sm:$0xf]
      %v1019 = vld [vmem:[%s5 + $0x2c] sm:$0xf]
      %v1020 = vld [vmem:[%s5 + $0x30] sm:$0xf]
      %v1021 = vld [vmem:[%s5 + $0x34] sm:$0xf]
      %v1022 = vld [vmem:[%s5 + $0x38] sm:$0xf]
      %v1023 = vld [vmem:[%s5 + $0x3c] sm:$0xf]
      %v1024 = vld [vmem:[%s6] sm:$0x1]
      %v1026 = vlaneseq
      %v1027 = vshrl.u32 %v1026, 7
      %v1028 = vsub.s32 0, %v1027
      %v1029 = vrot.slane %v1024, %v1028
      %v1047 = vunpack.c.l.b16 %v1008
      %v1048 = vunpack.c.l.b16 %v1009
      %v1049 = vunpack.c.l.b16 %v1010
      %v1050 = vunpack.c.l.b16 %v1011
      %v1051 = vunpack.c.l.b16 %v1012
      %v1052 = vunpack.c.l.b16 %v1013
      %v1053 = vunpack.c.l.b16 %v1014
      %v1054 = vunpack.c.l.b16 %v1015
      %v1055 = vunpack.c.l.b16 %v1016
      %v1056 = vunpack.c.l.b16 %v1017
      %v1057 = vunpack.c.l.b16 %v1018
      %v1058 = vunpack.c.l.b16 %v1019
      %v1059 = vunpack.c.l.b16 %v1020
      %v1060 = vunpack.c.l.b16 %v1021
      %v1061 = vunpack.c.l.b16 %v1022
      %v1062 = vunpack.c.l.b16 %v1023
      %v1063 = vpack.c.b16 %v1048, %v1047
      %v1064 = vpack.c.b16 %v1050, %v1049
      %v1065 = vpack.c.b16 %v1052, %v1051
      %v1066 = vpack.c.b16 %v1054, %v1053
      %v1067 = vpack.c.b16 %v1056, %v1055
      %v1068 = vpack.c.b16 %v1058, %v1057
      %v1069 = vpack.c.b16 %v1060, %v1059
      %v1070 = vpack.c.b16 %v1062, %v1061
      %1079 = vmatprep.subr.bf16.mxu0 0
      %1080 = vmatpush1.bf16.msra.mxu0 %v1063
      %1081 = vmatprep.subr.bf16.mxu0 0
      %1082 = vmatpush1.bf16.msra.mxu0 %v1064
      %1083 = vmatprep.subr.bf16.mxu0 0
      %1084 = vmatpush1.bf16.msra.mxu0 %v1065
      %1085 = vmatprep.subr.bf16.mxu0 0
      %1086 = vmatpush1.bf16.msra.mxu0 %v1066
      %1087 = vmatprep.subr.bf16.mxu0 0
      %1088 = vmatpush1.bf16.msra.mxu0 %v1067
      %1089 = vmatprep.subr.bf16.mxu0 0
      %1090 = vmatpush1.bf16.msra.mxu0 %v1068
      %1091 = vmatprep.subr.bf16.mxu0 0
      %1092 = vmatpush1.bf16.msra.mxu0 %v1069
      %1093 = vmatprep.subr.bf16.mxu0 0
      %1094 = vmatpush1.bf16.msra.mxu0 %v1070
      %1095 = vmatprep.subr.bf16.mxu0 0
      %1096 = vmatpush1.bf16.msra.mxu0 0
      %1097 = vmatprep.subr.bf16.mxu0 0
      %1098 = vmatpush1.bf16.msra.mxu0 0
      %1099 = vmatprep.subr.bf16.mxu0 0
      %1100 = vmatpush1.bf16.msra.mxu0 0
      %1101 = vmatprep.subr.bf16.mxu0 0
      %1102 = vmatpush1.bf16.msra.mxu0 0
      %1103 = vmatprep.subr.bf16.mxu0 0
      %1104 = vmatpush1.bf16.msra.mxu0 0
      %1105 = vmatprep.subr.bf16.mxu0 0
      %1106 = vmatpush1.bf16.msra.mxu0 0
      %1107 = vmatprep.subr.bf16.mxu0 0
      %1108 = vmatpush1.bf16.msra.mxu0 0
      %1109 = vmatprep.subr.bf16.mxu0 0
      %1110 = vmatpush1.bf16.msra.mxu0 0
      %1111 = vmatprep.mubr.bf16.mxu0 0
      %1112 = vmatmul.mubr.bf16.gmra.mrb[0].mxu0 %v1007
      %v1113 = vpop.f32.mrb[0].mxu0
      %v1114 = vadd.f32 %v1029, %v1113
      %v1115 = vpop.f32.mrb[0].mxu0
      %v1116 = vpop.f32.mrb[0].mxu0
      %v1117 = vadd.f32 %v1029, %v1116
      %v1118 = vpop.f32.mrb[0].mxu0
      %1119 = vdwg.mxu0
      %1120 = vst [vmem:[%s7] sm:$0xff] %v1114
      %1121 = vst [vmem:[%s7 + $0x8] sm:$0xff] %v1117
    $region41: #{_lambda_.1} parent=1 // pred_fallthru
      _
    // Predicated region
    $region42: #{_lambda_.1} parent=1 // pred_check
      _
    $region43: #{_lambda_.1} parent=1 // pred_check_branch
      %1123 = sbr.rel (0) target = $region45
    $region44: #{_lambda_.1} parent=1 // pred_region
      _
    $region45: #{_lambda_.1} parent=1 // pred_fallthru
      _
    // Predicated region
    $region46: #{_lambda_.1} parent=1 // pred_check
      _
    $region47: #{_lambda_.1} parent=1 // pred_check_branch
      %1125 = sbr.rel (0) target = $region49
    $region48: #{_lambda_.1} parent=1 // pred_region
      _
    $region49: #{_lambda_.1} parent=1 // pred_fallthru
      _
    %1126 = vsyncpa [#allocation4], 1

</llo_original>
